<compile_context>
chip_gen: v7x
topology: tpu7x:2x2x1
jax: 0.10.0
libtpu: 0.0.40
codegen_flags: <defaults>
</compile_context>

<pallas_src>
import math
from functools import partial

import jax
import jax.numpy as jnp
from jax.experimental import pallas as pl
from jax.experimental.pallas import tpu as pltpu


def _round_up(x, m):
    return (x + m - 1) // m * m


def _proj_kernel(x_ref, w_ref, b_ref, o_ref):
    # x_ref: (TM, K)  bf16          w_ref: (K, Ep) bf16 (VMEM-resident, const index_map)
    # b_ref: (1, Ep)  f32 (resident) o_ref: (TM, Ep) out dtype
    acc = jnp.dot(x_ref[...], w_ref[...], preferred_element_type=jnp.float32)
    o_ref[...] = (acc + b_ref[...]).astype(o_ref.dtype)


def _patchify_cpp(x, patch_h, patch_w):
    # 'b c (h p1) (w p2) -> b (h w) (c p1 p2)'.  p2 (the input-minor axis) stays
    # the minor output axis, so the transpose moves contiguous runs of p2 elements
    # instead of gathering C with stride H*W (as the module's '(p1 p2 c)' would).
    B, C, H, W = x.shape
    h, w = H // patch_h, W // patch_w
    x = x.reshape(B, C, h, patch_h, w, patch_w)
    x = x.transpose(0, 2, 4, 1, 3, 5)                    # (B, h, w, C, p1, p2)
    return x.reshape(B, h * w, C * patch_h * patch_w)    # (B, N, K)


def _choose_tm(M, tm_max):
    # Big streaming tiles for the HBM roofline, but keep >= 2 grid steps so the
    # "parallel" token axis can be split across v7x's two TensorCores.
    TM = min(tm_max, _round_up(M, 16))
    while TM > 128 and pl.cdiv(M, TM) < 2:
        TM //= 2
    return _round_up(TM, 16)


@partial(jax.jit,
         static_argnames=("patch_h", "patch_w", "tm", "compute_dtype", "out_dtype"))
def patch_embed_2d(x, w, b, *, patch_h, patch_w, tm=512,
                   compute_dtype=jnp.bfloat16, out_dtype=None):
    """PatchEmbed2d forward.

    x: (B, C, H, W); w: (patch_dim, embed_dim) with rows in the module's
    '(p1 p2 c)' order (= torch Linear weight.T); b: (embed_dim,).
    """
    B, C, H, W = x.shape
    K, E = w.shape
    assert K == C * patch_h * patch_w
    out_dtype = jnp.dtype(x.dtype if out_dtype is None else out_dtype)

    # Cast first (halves transpose traffic), then patchify in '(c p1 p2)' order.
    xp = _patchify_cpp(x.astype(compute_dtype), patch_h, patch_w)   # (B, N, K)
    N = xp.shape[1]
    M = B * N
    x2 = xp.reshape(M, K)

    # Permute the (tiny) weight rows '(p1 p2 c)' -> '(c p1 p2)' to match xp.
    w_cpp = (w.reshape(patch_h, patch_w, C, E)
              .transpose(2, 0, 1, 3)
              .reshape(K, E))

    # Tiling: token axis tiled by TM; K kept at the full (unpadded) array dim;
    # E lane-padded to a multiple of 128 only when necessary.
    TM = _choose_tm(M, tm)
    Mp = _round_up(M, TM)
    Ep = _round_up(E, 128)

    x2 = jnp.pad(x2, ((0, Mp - M), (0, 0)))
    wp = jnp.pad(w_cpp, ((0, 0), (0, Ep - E))).astype(compute_dtype)
    bp = jnp.pad(b, (0, Ep - E)).astype(jnp.float32).reshape(1, Ep)

    in_bytes = jnp.dtype(compute_dtype).itemsize
    out_bytes = out_dtype.itemsize

    # VMEM: double-buffered x/out tiles + weight/bias (counted double-buffered to
    # stay honest even though their index_map is constant).  48 MiB cap keeps
    # headroom inside v7x's 64 MiB per-core VMEM.
    vmem_bytes = (2 * TM * K * in_bytes
                  + 2 * TM * Ep * out_bytes
                  + 2 * K * Ep * in_bytes
                  + 2 * Ep * 4)
    vmem_limit = int(min(max(int(1.5 * vmem_bytes), 8 << 20), 48 << 20))

    cost = pl.CostEstimate(
        flops=2 * Mp * K * Ep,
        transcendentals=0,
        bytes_accessed=(Mp * K * in_bytes + K * Ep * in_bytes
                        + Ep * 4 + Mp * Ep * out_bytes),
    )

    out = pl.pallas_call(
        _proj_kernel,
        out_shape=jax.ShapeDtypeStruct((Mp, Ep), out_dtype),
        grid_spec=pltpu.PrefetchScalarGridSpec(
            num_scalar_prefetch=0,
            grid=(Mp // TM,),
            in_specs=[
                pl.BlockSpec((TM, K), lambda i: (i, 0)),   # x tile (pipelined)
                pl.BlockSpec((K, Ep), lambda i: (0, 0)),   # weight (resident)
                pl.BlockSpec((1, Ep), lambda i: (0, 0)),   # bias (resident)
            ],
            out_specs=pl.BlockSpec((TM, Ep), lambda i: (i, 0)),
        ),
        compiler_params=pltpu.CompilerParams(
            dimension_semantics=("parallel",),   # token loop -> both v7x TCs
            vmem_limit_bytes=vmem_limit,
        ),
        cost_estimate=cost,
    )(x2, wp, bp)

    # No-op slice when Mp == M and Ep == E (typical lane-aligned embed dims).
    return out[:M, :E].reshape(B, N, E)


def _reference(x, w, b, patch_h, patch_w):
    # Module semantics: '(p1 p2 c)' K-ordering, f32 matmul.
    B, C, H, W = x.shape
    h, wdim = H // patch_h, W // patch_w
    xr = x.reshape(B, C, h, patch_h, wdim, patch_w)
    xr = xr.transpose(0, 2, 4, 3, 5, 1)
    xr = xr.reshape(B, h * wdim, patch_h * patch_w * C)
    return xr @ w + b


if __name__ == "__main__":
    # Small shapes consistent with the module's forward.
    in_img_size = (64, 64)
    in_channels = 4
    patch_h = patch_w = 4
    embed_dim = 128
    batch = 2

    patch_dim = in_channels * patch_h * patch_w                              # 64
    num_patches = (in_img_size[0] // patch_h) * (in_img_size[1] // patch_w)  # 256

    key = jax.random.PRNGKey(0)
    kx, kw, kb = jax.random.split(key, 3)

    # nn.Linear-style init (U[-1/sqrt(fan_in), 1/sqrt(fan_in)]);
    # weight stored as (patch_dim, embed_dim), i.e. torch weight transposed.
    bound = 1.0 / math.sqrt(patch_dim)
    w = jax.random.uniform(kw, (patch_dim, embed_dim), jnp.float32, -bound, bound)
    b = jax.random.uniform(kb, (embed_dim,), jnp.float32, -bound, bound)
    x = jax.random.normal(kx, (batch, in_channels, *in_img_size), jnp.float32)

    out = patch_embed_2d(x, w, b, patch_h=patch_h, patch_w=patch_w)
    out = jax.block_until_ready(out)

    ref = _reference(x, w, b, patch_h, patch_w)
    assert out.shape == (batch, num_patches, embed_dim), out.shape
    max_err = float(jnp.max(jnp.abs(out - ref)))
    # bf16 MXU inputs with f32 accumulation vs f32 reference -> loosened tolerance.
    assert max_err < 2e-2, f"mismatch vs reference: max abs err = {max_err}"

    print("KERNEL_OK")
</pallas_src>

<mosaic_0001>
module attributes {stable_mosaic.version = 11 : i64} {
  func.func @_proj_kernel(%arg0: i32, %arg1: memref<256x64xbf16, #tpu.memory_space<vmem>>, %arg2: memref<64x128xbf16, #tpu.memory_space<vmem>>, %arg3: memref<1x128xf32, #tpu.memory_space<vmem>>, %arg4: memref<256x128xf32, #tpu.memory_space<vmem>>) attributes {dimension_semantics = [#tpu.dimension_semantics<parallel>], iteration_bounds = array<i64: 2>, scalar_prefetch = 0 : i64, scratch_operands = 0 : i64, tpu.core_type = #tpu.core_type<tc>, window_params = [{transform_indices = @transform_0, window_bounds = array<i64: 256, 64>}, {pipeline_mode = #tpu.pipeline_mode<synchronous>, transform_indices = @transform_1, window_bounds = array<i64: 64, 128>}, {pipeline_mode = #tpu.pipeline_mode<synchronous>, transform_indices = @transform_2, window_bounds = array<i64: 1, 128>}, {transform_indices = @transform_3, window_bounds = array<i64: 256, 128>}]} {
    %c0 = arith.constant 0 : index
    %c0_0 = arith.constant 0 : index
    %0 = vector.load %arg1[%c0, %c0_0] : memref<256x64xbf16, #tpu.memory_space<vmem>>, vector<256x64xbf16>
    %c0_1 = arith.constant 0 : index
    %c0_2 = arith.constant 0 : index
    %1 = vector.load %arg2[%c0_1, %c0_2] : memref<64x128xbf16, #tpu.memory_space<vmem>>, vector<64x128xbf16>
    %cst = arith.constant dense<0.000000e+00> : vector<256x128xf32>
    %2 = tpu.matmul %0, %1, %cst {dimension_numbers = #tpu.dot_dimension_numbers<[1], [0], [0], [1], [0, 0, 1, 1], [], []>} : vector<256x64xbf16>, vector<64x128xbf16>, vector<256x128xf32> -> vector<256x128xf32>
    %c0_3 = arith.constant 0 : index
    %c0_4 = arith.constant 0 : index
    %3 = vector.load %arg3[%c0_3, %c0_4] : memref<1x128xf32, #tpu.memory_space<vmem>>, vector<1x128xf32>
    %4 = vector.broadcast %3 : vector<1x128xf32> to vector<256x128xf32>
    %5 = arith.addf %2, %4 : vector<256x128xf32>
    %c0_5 = arith.constant 0 : index
    %c0_6 = arith.constant 0 : index
    %6 = vector.load %arg4[%c0_5, %c0_6] : memref<256x128xf32, #tpu.memory_space<vmem>>, vector<256x128xf32>
    tpu.vector_store %arg4[%c0_5, %c0_6], %5 {strides = array<i32>} : memref<256x128xf32, #tpu.memory_space<vmem>>, vector<256x128xf32>,
    return
  }
  func.func @transform_0(%arg0: i32) -> (i32, i32) {
    %c0_i32 = arith.constant 0 : i32
    %c0_i32_0 = arith.constant 0 : i32
    return %arg0, %c0_i32 : i32, i32
  }
  func.func @transform_1(%arg0: i32) -> (i32, i32) {
    %c0_i32 = arith.constant 0 : i32
    %c0_i32_0 = arith.constant 0 : i32
    %c0_i32_1 = arith.constant 0 : i32
    return %c0_i32, %c0_i32_0 : i32, i32
  }
  func.func @transform_2(%arg0: i32) -> (i32, i32) {
    %c0_i32 = arith.constant 0 : i32
    %c0_i32_0 = arith.constant 0 : i32
    %c0_i32_1 = arith.constant 0 : i32
    return %c0_i32, %c0_i32_0 : i32, i32
  }
  func.func @transform_3(%arg0: i32) -> (i32, i32) {
    %c0_i32 = arith.constant 0 : i32
    %c0_i32_0 = arith.constant 0 : i32
    return %arg0, %c0_i32 : i32, i32
  }
}

</mosaic_0001>

<llo_original>
// kernel: patch_embed_2d.1
$region0: #{patch_embed_2d.1}
  #allocation0 [shape = 'u32[]', space=smem, size = 0x4, offset = 0x4, fixed_abs, tag = 'smem constant byte address 0x4 - core index']
  #allocation1 [shape = 'u32[144,128]{1,0:T(1,128)}', space=vmem, size = 0x12000, scoped, tag = 'internal scratch']
  %s0 = inlined_call_operand.vmem [shape: bf16[512,64], index: 0, kind: input, shape index: {}]
  %s1 = inlined_call_operand.vmem [shape: bf16[64,128], index: 1, kind: input, shape index: {}]
  %s2 = inlined_call_operand.vmem [shape: f32[1,128], index: 2, kind: input, shape index: {}]
  %s3 = inlined_call_operand.hbm [shape: f32[512,128], index: 3, kind: output, shape index: {}]
  %s4 = sld [smem:[#allocation0]]
  $region45: #{patch_embed_2d.1} parent=0
    _
  %s6 = ssub.s32 1, %s4
  %s7 = scalar_select 0, %s6, %s4
  $region1: #{patch_embed_2d.1} parent=0
    #allocation2 [shape = 'u8[262144]{0}', space=vmem, size = 0x40000, scoped, tag = 'output window, operand 0']
    #allocation3 [shape = 's32[2]{0}', space=sflag, size = 0x8, scoped, tag = 'scoped memory for patch_embed_2d.1']
    %8 = vsyncpa [#allocation3], 0
    %s9 = scalar_lea.sflag [#allocation3], 1
    %10 = vsyncpa %s9, 0
    loop: start=0, step=1, limit=4
    $region2: #{patch_embed_2d.1} parent=1 // loop_pre_header
      _
    $region3: #{patch_embed_2d.1} parent=1 // loop_header
      %s12 = sphi 0, %s16
      %p13 = scmp.ge.s32.totalorder %s12, 4
      %s22 = sphi 0, %s24
      %s25 = sphi 0, %s22
      %s26 = sphi 0, %s25
      %s42 = sphi 0, %s26
      %s46 = sphi 0, %s46
      %s48 = sphi 0, %s46
      %s49 = sphi 0, %s48
      %s63 = sphi 0, %s49
      %s67 = sphi 0, %s67
      %s69 = sphi 0, %s67
      %s70 = sphi 0, %s69
      %s84 = sphi 0, %s70
      %s90 = sphi 0, %s92
      %s93 = sphi 0, %s90
      %s94 = sphi 0, %s93
      %s110 = sphi 0, %s94
    $region4: #{patch_embed_2d.1} parent=1 // loop_header_branch
      %15 = sbr.rel (%p13) target = $region8
    $region5: #{patch_embed_2d.1} parent=1 // loop_body
      %s17 = ssub.s32 %s12, 1
      %s18 = ssub.s32 %s12, 2
      %s19 = sadd.s32 %s12, 1
      %s20 = ssub.s32 %s12, %s19
      %p21 = scmp.eq.s32.totalorder %s20, 0
      %s23 = sadd.s32 %s22, 1
      %s24 = scalar_select %p21, %s22, %s23
      %p27 = pneg %p21
      %p28 = scmp.eq.s32.totalorder %s12, 1
      %p29 = por %p27, %p28
      %p30 = scmp.ne.s32.totalorder %s22, %s25
      %p31 = scmp.eq.s32.totalorder %s12, 0
      %p32 = por %p30, %p31
      %p33 = scmp.ne.s32.totalorder %s22, %s25
      %p34 = scmp.eq.s32.totalorder %s17, 1
      %p35 = por %p33, %p34
      %p36 = scmp.ne.s32.totalorder %s25, %s26
      %p37 = scmp.eq.s32.totalorder %s17, 0
      %p38 = por %p36, %p37
      %p39 = scmp.ne.s32.totalorder %s25, %s26
      %p40 = scmp.eq.s32.totalorder %s18, 1
      %p41 = por %p39, %p40
      %p43 = scmp.ne.s32.totalorder %s26, %s42
      %p44 = scmp.eq.s32.totalorder %s18, 0
      %p45 = por %p43, %p44
      %s47 = sadd.s32 %s46, 1
      %p50 = scmp.eq.s32.totalorder %s12, 1
      %p51 = scmp.ne.s32.totalorder %s46, %s48
      %p52 = scmp.eq.s32.totalorder %s12, 0
      %p53 = por %p51, %p52
      %p54 = scmp.ne.s32.totalorder %s46, %s48
      %p55 = scmp.eq.s32.totalorder %s17, 1
      %p56 = por %p54, %p55
      %p57 = scmp.ne.s32.totalorder %s48, %s49
      %p58 = scmp.eq.s32.totalorder %s17, 0
      %p59 = por %p57, %p58
      %p60 = scmp.ne.s32.totalorder %s48, %s49
      %p61 = scmp.eq.s32.totalorder %s18, 1
      %p62 = por %p60, %p61
      %p64 = scmp.ne.s32.totalorder %s49, %s63
      %p65 = scmp.eq.s32.totalorder %s18, 0
      %p66 = por %p64, %p65
      %s68 = sadd.s32 %s67, 1
      %p71 = scmp.eq.s32.totalorder %s12, 1
      %p72 = scmp.ne.s32.totalorder %s67, %s69
      %p73 = scmp.eq.s32.totalorder %s12, 0
      %p74 = por %p72, %p73
      %p75 = scmp.ne.s32.totalorder %s67, %s69
      %p76 = scmp.eq.s32.totalorder %s17, 1
      %p77 = por %p75, %p76
      %p78 = scmp.ne.s32.totalorder %s69, %s70
      %p79 = scmp.eq.s32.totalorder %s17, 0
      %p80 = por %p78, %p79
      %p81 = scmp.ne.s32.totalorder %s69, %s70
      %p82 = scmp.eq.s32.totalorder %s18, 1
      %p83 = por %p81, %p82
      %p85 = scmp.ne.s32.totalorder %s70, %s84
      %p86 = scmp.eq.s32.totalorder %s18, 0
      %p87 = por %p85, %p86
      %s88 = ssub.s32 %s12, %s19
      %p89 = scmp.eq.s32.totalorder %s88, 0
      %s91 = sadd.s32 %s90, 1
      %s92 = scalar_select %p89, %s90, %s91
      %p95 = pneg %p89
      %p96 = scmp.eq.s32.totalorder %s12, 1
      %p97 = por %p95, %p96
      %p98 = scmp.ne.s32.totalorder %s90, %s93
      %p99 = scmp.eq.s32.totalorder %s12, 0
      %p100 = por %p98, %p99
      %p101 = scmp.ne.s32.totalorder %s90, %s93
      %p102 = scmp.eq.s32.totalorder %s17, 1
      %p103 = por %p101, %p102
      %p104 = scmp.ne.s32.totalorder %s93, %s94
      %p105 = scmp.eq.s32.totalorder %s17, 0
      %p106 = por %p104, %p105
      %p107 = scmp.ne.s32.totalorder %s93, %s94
      %p108 = scmp.eq.s32.totalorder %s18, 1
      %p109 = por %p107, %p108
      %p111 = scmp.ne.s32.totalorder %s94, %s110
      %p112 = scmp.eq.s32.totalorder %s18, 0
      %p113 = por %p111, %p112
      %p114 = scmp.le.s32.totalorder 1, %s12
      %p115 = scmp.lt.s32.totalorder %s12, 3
      %p116 = pnand %p114, %p115
      %p117 = pneg %p116
      // Predicated region
      $region9: #{patch_embed_2d.1} parent=5 // pred_check
        _
      $region10: #{patch_embed_2d.1} parent=5 // pred_check_branch
        %119 = sbr.rel (%p116) target = $region12
      $region11: #{patch_embed_2d.1} parent=5 // pred_region
        %s120 = ssub.s32 %s12, 1
        // Predicated region
        $region13: #{patch_embed_2d.1} parent=11 // pred_check
          %p121 = pneg %p59
        $region14: #{patch_embed_2d.1} parent=11 // pred_check_branch
          %123 = sbr.rel (%p121) target = $region16
        $region15: #{patch_embed_2d.1} parent=11 // pred_region
          _
        $region16: #{patch_embed_2d.1} parent=11 // pred_fallthru
          _
        // Predicated region
        $region17: #{patch_embed_2d.1} parent=11 // pred_check
          %p124 = pneg %p80
        $region18: #{patch_embed_2d.1} parent=11 // pred_check_branch
          %126 = sbr.rel (%p124) target = $region20
        $region19: #{patch_embed_2d.1} parent=11 // pred_region
          _
        $region20: #{patch_embed_2d.1} parent=11 // pred_fallthru
          _
      $region12: #{patch_embed_2d.1} parent=5 // pred_fallthru
        _
      %p127 = scmp.lt.s32.totalorder %s12, 2
      // Predicated region
      $region21: #{patch_embed_2d.1} parent=5 // pred_check
        %p128 = pneg %p127
      $region22: #{patch_embed_2d.1} parent=5 // pred_check_branch
        %130 = sbr.rel (%p128) target = $region24
      $region23: #{patch_embed_2d.1} parent=5 // pred_region
        // Predicated region
        $region25: #{patch_embed_2d.1} parent=23 // pred_check
          %p131 = pneg %p32
        $region26: #{patch_embed_2d.1} parent=23 // pred_check_branch
          %133 = sbr.rel (%p131) target = $region28
        $region27: #{patch_embed_2d.1} parent=23 // pred_region
          %s134 = smul.u32 32, %s12
          %p135 = scmp.lt.s32.totalorder %s134, 63
          %s136 = scalar_select %p135, %s134, 63
          %s137 = smul.addr %s136, 4
          %s138 = scalar_lea.vmem %s0, %s137
          %s139 = smul.u32 32, %s12
        $region28: #{patch_embed_2d.1} parent=23 // pred_fallthru
          _
      $region24: #{patch_embed_2d.1} parent=5 // pred_fallthru
        _
      %p140 = scmp.le.s32.totalorder 1, %s12
      %p141 = scmp.lt.s32.totalorder %s12, 3
      %p142 = pnand %p140, %p141
      %p143 = pneg %p142
      // Predicated region
      $region29: #{patch_embed_2d.1} parent=5 // pred_check
        _
      $region30: #{patch_embed_2d.1} parent=5 // pred_check_branch
        %145 = sbr.rel (%p142) target = $region32
      $region31: #{patch_embed_2d.1} parent=5 // pred_region
        %s146 = ssub.s32 %s12, 1
        %s147 = smul.u32 32, %s17
        %p148 = scmp.lt.s32.totalorder %s147, 63
        %s149 = scalar_select %p148, %s147, 63
        %s150 = smul.addr %s149, 4
        %s151 = scalar_lea.vmem %s0, %s150
        %p152 = pneg %p38
        %p153 = pneg %p35
        %p154 = pneg %p59
        %p155 = pneg %p56
        %p156 = pneg %p80
        %p157 = pneg %p77
        %p158 = pneg %p106
        %p159 = pneg %p103
        %s160 = sand.u32 %s93, 1
        %s161 = scalar_lea.sflag [#allocation3], %s160
        %s162 = sand.u32 %s93, 1
        %s163 = smul.addr %s162, 256
        %s164 = scalar_lea.vmem [#allocation2], %s163
        %s165 = smul.u32 32, %s17
        %p166 = scmp.lt.s32.totalorder %s165, 63
        %s167 = scalar_select %p166, %s165, 63
        %s168 = smul.addr %s167, 4
        %s169 = scalar_lea.vmem %s0, %s168
        %s170 = smul.u32 32, %s17
        %s171 = smul.u32 32, %s17
        %v173 = vld [vmem:[%s169] sm:$0xf]
        %v174 = vld [vmem:[%s169 + $0x4] sm:$0xf]
        %v175 = vld [vmem:[%s169 + $0x8] sm:$0xf]
        %v176 = vld [vmem:[%s169 + $0xc] sm:$0xf]
        %v177 = vld [vmem:[%s169 + $0x10] sm:$0xf]
        %v178 = vld [vmem:[%s169 + $0x14] sm:$0xf]
        %v179 = vld [vmem:[%s169 + $0x18] sm:$0xf]
        %v180 = vld [vmem:[%s169 + $0x1c] sm:$0xf]
        %v181 = vld [vmem:[%s169 + $0x20] sm:$0xf]
        %v182 = vld [vmem:[%s169 + $0x24] sm:$0xf]
        %v183 = vld [vmem:[%s169 + $0x28] sm:$0xf]
        %v184 = vld [vmem:[%s169 + $0x2c] sm:$0xf]
        %v185 = vld [vmem:[%s169 + $0x30] sm:$0xf]
        %v186 = vld [vmem:[%s169 + $0x34] sm:$0xf]
        %v187 = vld [vmem:[%s169 + $0x38] sm:$0xf]
        %v188 = vld [vmem:[%s169 + $0x3c] sm:$0xf]
        %v189 = vld [vmem:[%s169 + $0x40] sm:$0xf]
        %v190 = vld [vmem:[%s169 + $0x44] sm:$0xf]
        %v191 = vld [vmem:[%s169 + $0x48] sm:$0xf]
        %v192 = vld [vmem:[%s169 + $0x4c] sm:$0xf]
        %v193 = vld [vmem:[%s169 + $0x50] sm:$0xf]
        %v194 = vld [vmem:[%s169 + $0x54] sm:$0xf]
        %v195 = vld [vmem:[%s169 + $0x58] sm:$0xf]
        %v196 = vld [vmem:[%s169 + $0x5c] sm:$0xf]
        %v197 = vld [vmem:[%s169 + $0x60] sm:$0xf]
        %v198 = vld [vmem:[%s169 + $0x64] sm:$0xf]
        %v199 = vld [vmem:[%s169 + $0x68] sm:$0xf]
        %v200 = vld [vmem:[%s169 + $0x6c] sm:$0xf]
        %v201 = vld [vmem:[%s169 + $0x70] sm:$0xf]
        %v202 = vld [vmem:[%s169 + $0x74] sm:$0xf]
        %v203 = vld [vmem:[%s169 + $0x78] sm:$0xf]
        %v204 = vld [vmem:[%s169 + $0x7c] sm:$0xf]
        %v205 = vld [vmem:[%s1] sm:$0xf]
        %v206 = vld [vmem:[%s1 + $0x4] sm:$0xf]
        %v207 = vld [vmem:[%s1 + $0x8] sm:$0xf]
        %v208 = vld [vmem:[%s1 + $0xc] sm:$0xf]
        %v209 = vld [vmem:[%s1 + $0x10] sm:$0xf]
        %v210 = vld [vmem:[%s1 + $0x14] sm:$0xf]
        %v211 = vld [vmem:[%s1 + $0x18] sm:$0xf]
        %v212 = vld [vmem:[%s1 + $0x1c] sm:$0xf]
        %v213 = vld [vmem:[%s2] sm:$0x1]
        %v215 = vlaneseq
        %v216 = vshrl.u32 %v215, 7
        %v217 = vsub.s32 0, %v216
        %v218 = vrot.slane %v213, %v217
        %v252 = vunpack.c.l.b16 %v173
        %v253 = vunpack.c.l.b16 %v174
        %v254 = vunpack.c.l.b16 %v175
        %v255 = vunpack.c.l.b16 %v176
        %v256 = vunpack.c.l.b16 %v177
        %v257 = vunpack.c.l.b16 %v178
        %v258 = vunpack.c.l.b16 %v179
        %v259 = vunpack.c.l.b16 %v180
        %v260 = vunpack.c.l.b16 %v181
        %v261 = vunpack.c.l.b16 %v182
        %v262 = vunpack.c.l.b16 %v183
        %v263 = vunpack.c.l.b16 %v184
        %v264 = vunpack.c.l.b16 %v185
        %v265 = vunpack.c.l.b16 %v186
        %v266 = vunpack.c.l.b16 %v187
        %v267 = vunpack.c.l.b16 %v188
        %v268 = vunpack.c.l.b16 %v189
        %v269 = vunpack.c.l.b16 %v190
        %v270 = vunpack.c.l.b16 %v191
        %v271 = vunpack.c.l.b16 %v192
        %v272 = vunpack.c.l.b16 %v193
        %v273 = vunpack.c.l.b16 %v194
        %v274 = vunpack.c.l.b16 %v195
        %v275 = vunpack.c.l.b16 %v196
        %v276 = vunpack.c.l.b16 %v197
        %v277 = vunpack.c.l.b16 %v198
        %v278 = vunpack.c.l.b16 %v199
        %v279 = vunpack.c.l.b16 %v200
        %v280 = vunpack.c.l.b16 %v201
        %v281 = vunpack.c.l.b16 %v202
        %v282 = vunpack.c.l.b16 %v203
        %v283 = vunpack.c.l.b16 %v204
        %v284 = vpack.c.b16 %v253, %v252
        %v285 = vpack.c.b16 %v255, %v254
        %v286 = vpack.c.b16 %v257, %v256
        %v287 = vpack.c.b16 %v259, %v258
        %v288 = vpack.c.b16 %v261, %v260
        %v289 = vpack.c.b16 %v263, %v262
        %v290 = vpack.c.b16 %v265, %v264
        %v291 = vpack.c.b16 %v267, %v266
        %v292 = vpack.c.b16 %v269, %v268
        %v293 = vpack.c.b16 %v271, %v270
        %v294 = vpack.c.b16 %v273, %v272
        %v295 = vpack.c.b16 %v275, %v274
        %v296 = vpack.c.b16 %v277, %v276
        %v297 = vpack.c.b16 %v279, %v278
        %v298 = vpack.c.b16 %v281, %v280
        %v299 = vpack.c.b16 %v283, %v282
        %v308 = vunpack.c.l.b16 %v205
        %v309 = vunpack.c.l.b16 %v206
        %v310 = vunpack.c.l.b16 %v207
        %v311 = vunpack.c.l.b16 %v208
        %v312 = vunpack.c.l.b16 %v209
        %v313 = vunpack.c.l.b16 %v210
        %v314 = vunpack.c.l.b16 %v211
        %v315 = vunpack.c.l.b16 %v212
        %v316 = vpack.c.b16 %v309, %v308
        %v317 = vpack.c.b16 %v311, %v310
        %v318 = vpack.c.b16 %v313, %v312
        %v319 = vpack.c.b16 %v315, %v314
        %vm324 = vcmask 523264
        %v326 = vsel %vm324, %v284, 0
        %v329 = vsel %vm324, %v285, 0
        %v332 = vsel %vm324, %v286, 0
        %v335 = vsel %vm324, %v287, 0
        %v338 = vsel %vm324, %v288, 0
        %v341 = vsel %vm324, %v289, 0
        %v344 = vsel %vm324, %v290, 0
        %v347 = vsel %vm324, %v291, 0
        %v350 = vsel %vm324, %v292, 0
        %v353 = vsel %vm324, %v293, 0
        %v356 = vsel %vm324, %v294, 0
        %v359 = vsel %vm324, %v295, 0
        %v362 = vsel %vm324, %v296, 0
        %v365 = vsel %vm324, %v297, 0
        %v368 = vsel %vm324, %v298, 0
        %v371 = vsel %vm324, %v299, 0
        %373 = vmatprep.subr.bf16.mxu0 0
        %374 = vmatpush1.bf16.msra.mxu0 %v316
        %375 = vmatprep.subr.bf16.mxu0 0
        %376 = vmatpush1.bf16.msra.mxu0 %v317
        %377 = vmatprep.subr.bf16.mxu0 0
        %378 = vmatpush1.bf16.msra.mxu0 %v318
        %379 = vmatprep.subr.bf16.mxu0 0
        %380 = vmatpush1.bf16.msra.mxu0 %v319
        %381 = vmatprep.subr.bf16.mxu0 0
        %382 = vmatpush1.bf16.msra.mxu0 0
        %383 = vmatprep.subr.bf16.mxu0 0
        %384 = vmatpush1.bf16.msra.mxu0 0
        %385 = vmatprep.subr.bf16.mxu0 0
        %386 = vmatpush1.bf16.msra.mxu0 0
        %387 = vmatprep.subr.bf16.mxu0 0
        %388 = vmatpush1.bf16.msra.mxu0 0
        %389 = vmatprep.subr.bf16.mxu0 0
        %390 = vmatpush1.bf16.msra.mxu0 0
        %391 = vmatprep.subr.bf16.mxu0 0
        %392 = vmatpush1.bf16.msra.mxu0 0
        %393 = vmatprep.subr.bf16.mxu0 0
        %394 = vmatpush1.bf16.msra.mxu0 0
        %395 = vmatprep.subr.bf16.mxu0 0
        %396 = vmatpush1.bf16.msra.mxu0 0
        %397 = vmatprep.subr.bf16.mxu0 0
        %398 = vmatpush1.bf16.msra.mxu0 0
        %399 = vmatprep.subr.bf16.mxu0 0
        %400 = vmatpush1.bf16.msra.mxu0 0
        %401 = vmatprep.subr.bf16.mxu0 0
        %402 = vmatpush1.bf16.msra.mxu0 0
        %403 = vmatprep.subr.bf16.mxu0 0
        %404 = vmatpush1.bf16.msra.mxu0 0
        %405 = vmatprep.mubr.bf16.mxu0 0
        %406 = vmatmul.mubr.bf16.gmra.mrb[0].mxu0 %v326
        %v407 = vpop.f32.mrb[0].mxu0
        %v408 = vadd.f32 %v218, %v407
        %v409 = vpop.f32.mrb[0].mxu0
        %v410 = vpop.f32.mrb[0].mxu0
        %v411 = vadd.f32 %v218, %v410
        %v412 = vpop.f32.mrb[0].mxu0
        %413 = vmatprep.mubr.bf16.mxu0 0
        %414 = vmatmul.mubr.bf16.gmra.mrb[0].mxu0 %v329
        %v415 = vpop.f32.mrb[0].mxu0
        %v416 = vadd.f32 %v218, %v415
        %v417 = vpop.f32.mrb[0].mxu0
        %v418 = vpop.f32.mrb[0].mxu0
        %v419 = vadd.f32 %v218, %v418
        %v420 = vpop.f32.mrb[0].mxu0
        %421 = vmatprep.mubr.bf16.mxu0 0
        %422 = vmatmul.mubr.bf16.gmra.mrb[0].mxu0 %v332
        %v423 = vpop.f32.mrb[0].mxu0
        %v424 = vadd.f32 %v218, %v423
        %v425 = vpop.f32.mrb[0].mxu0
        %v426 = vpop.f32.mrb[0].mxu0
        %v427 = vadd.f32 %v218, %v426
        %v428 = vpop.f32.mrb[0].mxu0
        %429 = vmatprep.mubr.bf16.mxu0 0
        %430 = vmatmul.mubr.bf16.gmra.mrb[0].mxu0 %v335
        %v431 = vpop.f32.mrb[0].mxu0
        %v432 = vadd.f32 %v218, %v431
        %v433 = vpop.f32.mrb[0].mxu0
        %v434 = vpop.f32.mrb[0].mxu0
        %v435 = vadd.f32 %v218, %v434
        %v436 = vpop.f32.mrb[0].mxu0
        %437 = vmatprep.mubr.bf16.mxu0 0
        %438 = vmatmul.mubr.bf16.gmra.mrb[0].mxu0 %v338
        %v439 = vpop.f32.mrb[0].mxu0
        %v440 = vadd.f32 %v218, %v439
        %v441 = vpop.f32.mrb[0].mxu0
        %v442 = vpop.f32.mrb[0].mxu0
        %v443 = vadd.f32 %v218, %v442
        %v444 = vpop.f32.mrb[0].mxu0
        %445 = vmatprep.mubr.bf16.mxu0 0
        %446 = vmatmul.mubr.bf16.gmra.mrb[0].mxu0 %v341
        %v447 = vpop.f32.mrb[0].mxu0
        %v448 = vadd.f32 %v218, %v447
        %v449 = vpop.f32.mrb[0].mxu0
        %v450 = vpop.f32.mrb[0].mxu0
        %v451 = vadd.f32 %v218, %v450
        %v452 = vpop.f32.mrb[0].mxu0
        %453 = vmatprep.mubr.bf16.mxu0 0
        %454 = vmatmul.mubr.bf16.gmra.mrb[0].mxu0 %v344
        %v455 = vpop.f32.mrb[0].mxu0
        %v456 = vadd.f32 %v218, %v455
        %v457 = vpop.f32.mrb[0].mxu0
        %v458 = vpop.f32.mrb[0].mxu0
        %v459 = vadd.f32 %v218, %v458
        %v460 = vpop.f32.mrb[0].mxu0
        %461 = vmatprep.mubr.bf16.mxu0 0
        %462 = vmatmul.mubr.bf16.gmra.mrb[0].mxu0 %v347
        %v463 = vpop.f32.mrb[0].mxu0
        %v464 = vadd.f32 %v218, %v463
        %v465 = vpop.f32.mrb[0].mxu0
        %v466 = vpop.f32.mrb[0].mxu0
        %v467 = vadd.f32 %v218, %v466
        %v468 = vpop.f32.mrb[0].mxu0
        %469 = vmatprep.mubr.bf16.mxu0 0
        %470 = vmatmul.mubr.bf16.gmra.mrb[0].mxu0 %v350
        %v471 = vpop.f32.mrb[0].mxu0
        %v472 = vadd.f32 %v218, %v471
        %v473 = vpop.f32.mrb[0].mxu0
        %v474 = vpop.f32.mrb[0].mxu0
        %v475 = vadd.f32 %v218, %v474
        %v476 = vpop.f32.mrb[0].mxu0
        %477 = vmatprep.mubr.bf16.mxu0 0
        %478 = vmatmul.mubr.bf16.gmra.mrb[0].mxu0 %v353
        %v479 = vpop.f32.mrb[0].mxu0
        %v480 = vadd.f32 %v218, %v479
        %v481 = vpop.f32.mrb[0].mxu0
        %v482 = vpop.f32.mrb[0].mxu0
        %v483 = vadd.f32 %v218, %v482
        %v484 = vpop.f32.mrb[0].mxu0
        %485 = vmatprep.mubr.bf16.mxu0 0
        %486 = vmatmul.mubr.bf16.gmra.mrb[0].mxu0 %v356
        %v487 = vpop.f32.mrb[0].mxu0
        %v488 = vadd.f32 %v218, %v487
        %v489 = vpop.f32.mrb[0].mxu0
        %v490 = vpop.f32.mrb[0].mxu0
        %v491 = vadd.f32 %v218, %v490
        %v492 = vpop.f32.mrb[0].mxu0
        %493 = vmatprep.mubr.bf16.mxu0 0
        %494 = vmatmul.mubr.bf16.gmra.mrb[0].mxu0 %v359
        %v495 = vpop.f32.mrb[0].mxu0
        %v496 = vadd.f32 %v218, %v495
        %v497 = vpop.f32.mrb[0].mxu0
        %v498 = vpop.f32.mrb[0].mxu0
        %v499 = vadd.f32 %v218, %v498
        %v500 = vpop.f32.mrb[0].mxu0
        %501 = vmatprep.mubr.bf16.mxu0 0
        %502 = vmatmul.mubr.bf16.gmra.mrb[0].mxu0 %v362
        %v503 = vpop.f32.mrb[0].mxu0
        %v504 = vadd.f32 %v218, %v503
        %v505 = vpop.f32.mrb[0].mxu0
        %v506 = vpop.f32.mrb[0].mxu0
        %v507 = vadd.f32 %v218, %v506
        %v508 = vpop.f32.mrb[0].mxu0
        %509 = vmatprep.mubr.bf16.mxu0 0
        %510 = vmatmul.mubr.bf16.gmra.mrb[0].mxu0 %v365
        %v511 = vpop.f32.mrb[0].mxu0
        %v512 = vadd.f32 %v218, %v511
        %v513 = vpop.f32.mrb[0].mxu0
        %v514 = vpop.f32.mrb[0].mxu0
        %v515 = vadd.f32 %v218, %v514
        %v516 = vpop.f32.mrb[0].mxu0
        %517 = vmatprep.mubr.bf16.mxu0 0
        %518 = vmatmul.mubr.bf16.gmra.mrb[0].mxu0 %v368
        %v519 = vpop.f32.mrb[0].mxu0
        %v520 = vadd.f32 %v218, %v519
        %v521 = vpop.f32.mrb[0].mxu0
        %v522 = vpop.f32.mrb[0].mxu0
        %v523 = vadd.f32 %v218, %v522
        %v524 = vpop.f32.mrb[0].mxu0
        %525 = vmatprep.mubr.bf16.mxu0 0
        %526 = vmatmul.mubr.bf16.gmra.mrb[0].mxu0 %v371
        %v527 = vpop.f32.mrb[0].mxu0
        %v528 = vadd.f32 %v218, %v527
        %v529 = vpop.f32.mrb[0].mxu0
        %v530 = vpop.f32.mrb[0].mxu0
        %v531 = vadd.f32 %v218, %v530
        %v532 = vpop.f32.mrb[0].mxu0
        %533 = vdwg.mxu0
        %534 = vst [vmem:[%s164] sm:$0xff] %v408
        %535 = vst [vmem:[%s164 + $0x8] sm:$0xff] %v411
        %536 = vst [vmem:[%s164 + $0x10] sm:$0xff] %v416
        %537 = vst [vmem:[%s164 + $0x18] sm:$0xff] %v419
        %538 = vst [vmem:[%s164 + $0x20] sm:$0xff] %v424
        %539 = vst [vmem:[%s164 + $0x28] sm:$0xff] %v427
        %540 = vst [vmem:[%s164 + $0x30] sm:$0xff] %v432
        %541 = vst [vmem:[%s164 + $0x38] sm:$0xff] %v435
        %542 = vst [vmem:[%s164 + $0x40] sm:$0xff] %v440
        %543 = vst [vmem:[%s164 + $0x48] sm:$0xff] %v443
        %544 = vst [vmem:[%s164 + $0x50] sm:$0xff] %v448
        %545 = vst [vmem:[%s164 + $0x58] sm:$0xff] %v451
        %546 = vst [vmem:[%s164 + $0x60] sm:$0xff] %v456
        %547 = vst [vmem:[%s164 + $0x68] sm:$0xff] %v459
        %548 = vst [vmem:[%s164 + $0x70] sm:$0xff] %v464
        %549 = vst [vmem:[%s164 + $0x78] sm:$0xff] %v467
        %550 = vst [vmem:[%s164 + $0x80] sm:$0xff] %v472
        %551 = vst [vmem:[%s164 + $0x88] sm:$0xff] %v475
        %552 = vst [vmem:[%s164 + $0x90] sm:$0xff] %v480
        %553 = vst [vmem:[%s164 + $0x98] sm:$0xff] %v483
        %554 = vst [vmem:[%s164 + $0xa0] sm:$0xff] %v488
        %555 = vst [vmem:[%s164 + $0xa8] sm:$0xff] %v491
        %556 = vst [vmem:[%s164 + $0xb0] sm:$0xff] %v496
        %557 = vst [vmem:[%s164 + $0xb8] sm:$0xff] %v499
        %558 = vst [vmem:[%s164 + $0xc0] sm:$0xff] %v504
        %559 = vst [vmem:[%s164 + $0xc8] sm:$0xff] %v507
        %560 = vst [vmem:[%s164 + $0xd0] sm:$0xff] %v512
        %561 = vst [vmem:[%s164 + $0xd8] sm:$0xff] %v515
        %562 = vst [vmem:[%s164 + $0xe0] sm:$0xff] %v520
        %563 = vst [vmem:[%s164 + $0xe8] sm:$0xff] %v523
        %564 = vst [vmem:[%s164 + $0xf0] sm:$0xff] %v528
        %565 = vst [vmem:[%s164 + $0xf8] sm:$0xff] %v531
        %s566 = sand.u32 %s93, 1
        %s567 = scalar_lea.sflag [#allocation3], %s566
        %s568 = sand.u32 %s93, 1
        %s569 = smul.addr %s568, 256
        %s570 = scalar_lea.vmem [#allocation2], %s569
        // Predicated region
        $region33: #{patch_embed_2d.1} parent=31 // pred_check
          %p571 = pneg %p103
        $region34: #{patch_embed_2d.1} parent=31 // pred_check_branch
          %573 = sbr.rel (%p571) target = $region36
        $region35: #{patch_embed_2d.1} parent=31 // pred_region
          %s574 = smul.u32 32, %s17
          %s576 = ssub.s32 4096, 4096
          %577 = vsyncadd %s567, %s576
          %s578 = smul.addr %s574, 128
          %s579 = scalar_lea.hbm %s3, %s578
          %s580 = sshll.u32 %s570, 4
          %s581 = int_to_ptr.vmem [resolvable:$true] %s580
          %586 = dma.vmem_to_hbm [thread:$0]  %s581, 4096, %s579, %s567, 128, 128, 8
        $region36: #{patch_embed_2d.1} parent=31 // pred_fallthru
          _
      $region32: #{patch_embed_2d.1} parent=5 // pred_fallthru
        _
      %p587 = scmp.le.s32.totalorder 2, %s12
      // Predicated region
      $region37: #{patch_embed_2d.1} parent=5 // pred_check
        %p588 = pneg %p587
      $region38: #{patch_embed_2d.1} parent=5 // pred_check_branch
        %590 = sbr.rel (%p588) target = $region40
      $region39: #{patch_embed_2d.1} parent=5 // pred_region
        %s591 = ssub.s32 %s12, 2
        // Predicated region
        $region41: #{patch_embed_2d.1} parent=39 // pred_check
          %p592 = pneg %p109
        $region42: #{patch_embed_2d.1} parent=39 // pred_check_branch
          %594 = sbr.rel (%p592) target = $region44
        $region43: #{patch_embed_2d.1} parent=39 // pred_region
          %s595 = sand.u32 %s94, 1
          %s596 = scalar_lea.sflag [#allocation3], %s595
          %s597 = sand.u32 %s94, 1
          %s598 = smul.addr %s597, 256
          %s599 = scalar_lea.vmem [#allocation2], %s598
          %600 = dma.done %s596, 4096
        $region44: #{patch_embed_2d.1} parent=39 // pred_fallthru
          _
      $region40: #{patch_embed_2d.1} parent=5 // pred_fallthru
        _
    $region6: #{patch_embed_2d.1} parent=1 // loop_footer
      %s16 = sadd.s32 1, %s12
    $region7: #{patch_embed_2d.1} parent=1 // loop_footer_branch
      %11 = sbr.rel target = $region3
    $region8: #{patch_embed_2d.1} parent=1 // loop_exit
      _
    %601 = vsyncpa [#allocation3], 1
    %s602 = scalar_lea.sflag [#allocation3], 1
    %603 = vsyncpa %s602, 1

</llo_original>
